<compile_context>
chip_gen: v7x
topology: tpu7x:2x2x1
jax: 0.10.0
libtpu: 0.0.40
codegen_flags: <defaults>
</compile_context>

<pallas_src>
from typing import NamedTuple

import jax
import jax.numpy as jnp
from jax import lax
from jax.experimental import pallas as pl
from jax.experimental.pallas import tpu as pltpu


_MIB = 1024 * 1024
# Double-buffered VMEM budget for the auto-pipelined blocks. 44 MiB is safe on v7x
# (64 MiB per TensorCore) and still allows TM=512, TN=1024 at d_model=4096 (~28 MiB).
# TODO(synk): raise budget (TN up to 2048) on v5e/v6e (128 MiB VMEM) via chip detection.
_VMEM_BUDGET = 44 * _MIB


def _round_up(v: int, m: int) -> int:
    return (v + m - 1) // m * m


def _footprint_bytes(tm: int, tn: int, d_model: int, out_bytes: int) -> int:
    # Per-block VMEM usage, x2 for double buffering by the BlockSpec pipeline.
    x_b = tm * d_model * 2          # bf16 x tile
    w_b = tn * d_model * 2          # bf16 weight tile (resident over the inner token axis)
    b_b = tn * 4                    # f32 bias row
    o_b = tm * tn * out_bytes       # output tile
    return 2 * (x_b + w_b + b_b + o_b)


def _select_tiles(m_hint, n_vocab, d_model, out_bytes, tm_pref, tn_pref, budget):
    tm = min(tm_pref, _round_up(m_hint, 16))        # 16: bf16 sublane packing
    tn = min(tn_pref, _round_up(n_vocab, 128))
    # Shrink TN first (weight slab dominates VMEM), then TM, until the budget fits.
    while _footprint_bytes(tm, tn, d_model, out_bytes) > budget and tn > 256:
        tn = _round_up(max(tn // 2, 128), 128)
    while _footprint_bytes(tm, tn, d_model, out_bytes) > budget and tm > 64:
        tm = _round_up(max(tm // 2, 16), 16)
    # TODO(synk): for extreme d_model where even (64, 256) blocks overflow the budget,
    # add a K grid axis with an f32 VMEM accumulator (zero at k==0, bias+store at last k).
    return tm, tn


def _generator_kernel(x_ref, w_ref, b_ref, o_ref):
    # x_ref: (TM, d_model) bf16 | w_ref: (TN, d_model) bf16 (nn.Linear layout, no transpose)
    # b_ref: (1, TN) f32        | o_ref: (TM, TN) out dtype
    acc = lax.dot_general(
        x_ref[...], w_ref[...],
        dimension_numbers=(((1,), (1,)), ((), ())),   # contract x dim1 with w dim1
        preferred_element_type=jnp.float32,           # f32 accumulation on the MXU
    )
    o_ref[...] = (acc + b_ref[...]).astype(o_ref.dtype)


class GeneratorParams(NamedTuple):
    weight: jax.Array      # (n_vocab_padded, d_model) bf16
    bias: jax.Array        # (1, n_vocab_padded) f32
    n_vocab: int
    tn: int
    tm_cap: int


def prepare_generator_params(weight, bias, *, tm_pref: int = 512,
                             tn_pref: int = 1024) -> GeneratorParams:
    """One-time (load-time) cast + pad of nn.Linear params: hoists per-call HBM passes."""
    n_vocab, d_model = weight.shape
    tm_cap, tn = _select_tiles(tm_pref, n_vocab, d_model, 4, tm_pref, tn_pref, _VMEM_BUDGET)
    n_p = _round_up(n_vocab, tn)

    w = weight.astype(jnp.bfloat16)                        # keeps (n_vocab, d_model) layout
    b2d = bias.astype(jnp.float32).reshape(1, n_vocab)
    if n_p != n_vocab:
        w = jnp.pad(w, ((0, n_p - n_vocab), (0, 0)))
        b2d = jnp.pad(b2d, ((0, 0), (0, n_p - n_vocab)))
    return GeneratorParams(weight=w, bias=b2d, n_vocab=n_vocab, tn=tn, tm_cap=tm_cap)


def generator_forward(x, params: GeneratorParams):
    """Pallas equivalent of Generator.forward: self.proj(x).

    x: (batch, seq, d_model) -> (batch, seq, n_vocab) in x.dtype.
    """
    b, s, d_model = x.shape
    assert d_model == params.weight.shape[1]
    m = b * s
    out_dtype = x.dtype
    out_bytes = jnp.dtype(out_dtype).itemsize

    tm = min(params.tm_cap, _round_up(m, 16))
    tn = params.tn
    m_p = _round_up(m, tm)
    n_p = params.weight.shape[0]

    x2d = x.reshape(m, d_model).astype(jnp.bfloat16)
    if m_p != m:
        x2d = jnp.pad(x2d, ((0, m_p - m), (0, 0)))

    vocab_tiles = n_p // tn
    token_tiles = m_p // tm
    # Vocab tiles outer, token tiles inner -> weight block index depends only on j, so the
    # (TN, d_model) weight slab stays resident in VMEM across all token tiles (W read once).
    grid = (vocab_tiles, token_tiles)

    flops = 2 * m_p * n_p * d_model
    bytes_accessed = (params.weight.size * 2               # W read once total
                      + x2d.size * 2 * vocab_tiles         # x re-streamed per vocab tile
                      + params.bias.size * 4
                      + m_p * n_p * out_bytes)             # logits written once
    vmem_limit = int(max(32 * _MIB,
                         min(_footprint_bytes(tm, tn, d_model, out_bytes) + 8 * _MIB,
                             56 * _MIB)))

    out2d = pl.pallas_call(
        _generator_kernel,
        out_shape=jax.ShapeDtypeStruct((m_p, n_p), out_dtype),
        grid_spec=pltpu.PrefetchScalarGridSpec(
            num_scalar_prefetch=0,
            grid=grid,
            in_specs=[
                pl.BlockSpec((tm, d_model), lambda j, i: (i, 0)),   # x: streams over tokens
                pl.BlockSpec((tn, d_model), lambda j, i: (j, 0)),   # W: resident over tokens
                pl.BlockSpec((1, tn), lambda j, i: (0, j)),         # bias slice per vocab tile
            ],
            out_specs=pl.BlockSpec((tm, tn), lambda j, i: (i, j)),
        ),
        compiler_params=pltpu.CompilerParams(
            # Outer vocab axis core-shardable (v7x megacore); inner token axis kept on one
            # core so the resident weight slab is not re-DMA'd per core.
            dimension_semantics=("parallel", "arbitrary"),
            vmem_limit_bytes=vmem_limit,
        ),
        cost_estimate=pl.CostEstimate(
            flops=flops, transcendentals=0, bytes_accessed=bytes_accessed),
    )(x2d, params.weight, params.bias)

    # Skip the full-logits copy when no padding fired (common: vocab multiple of 128).
    if m_p != m or n_p != params.n_vocab:
        out2d = out2d[:m, :params.n_vocab]
    return out2d.reshape(b, s, params.n_vocab)


def generator_forward_raw(x, weight, bias, *, tm_pref: int = 512, tn_pref: int = 1024):
    """Drop-in convenience: prepares params per call. Prefer prepare_generator_params once."""
    return generator_forward(x, prepare_generator_params(weight, bias,
                                                         tm_pref=tm_pref, tn_pref=tn_pref))


if __name__ == "__main__":
    # Small shapes consistent with the module's forward.
    batch, seq, d_model, n_vocab = 2, 8, 32, 128

    key = jax.random.PRNGKey(0)
    kx, kw, kb = jax.random.split(key, 3)

    # Deterministic parameter init mimicking nn.Linear default (U[-1/sqrt(d), 1/sqrt(d)]).
    bound = 1.0 / (d_model ** 0.5)
    weight = jax.random.uniform(kw, (n_vocab, d_model), jnp.float32, -bound, bound)
    bias = jax.random.uniform(kb, (n_vocab,), jnp.float32, -bound, bound)
    x = jax.random.normal(kx, (batch, seq, d_model), jnp.float32)

    # Hoisted (load-time) cast/pad of the weight and bias, then the Pallas forward.
    params = prepare_generator_params(weight, bias)
    out = jax.block_until_ready(generator_forward(x, params))

    # Reference with the same bf16 operand precision and f32 accumulation as the kernel.
    xb = x.astype(jnp.bfloat16).astype(jnp.float32)
    wb = weight.astype(jnp.bfloat16).astype(jnp.float32)
    ref = jnp.einsum("bsd,vd->bsv", xb, wb) + bias

    assert out.shape == (batch, seq, n_vocab)
    assert jnp.allclose(out, ref, atol=2e-3, rtol=2e-3), float(jnp.max(jnp.abs(out - ref)))

    print("KERNEL_OK")
</pallas_src>

<mosaic_0001>
module attributes {stable_mosaic.version = 11 : i64} {
  func.func @_generator_kernel(%arg0: i32, %arg1: i32, %arg2: memref<16x32xbf16, #tpu.memory_space<vmem>>, %arg3: memref<128x32xbf16, #tpu.memory_space<vmem>>, %arg4: memref<1x128xf32, #tpu.memory_space<vmem>>, %arg5: memref<16x128xf32, #tpu.memory_space<vmem>>) attributes {dimension_semantics = [#tpu.dimension_semantics<parallel>, #tpu.dimension_semantics<arbitrary>], iteration_bounds = array<i64: 1, 1>, scalar_prefetch = 0 : i64, scratch_operands = 0 : i64, tpu.core_type = #tpu.core_type<tc>, window_params = [{transform_indices = @transform_0, window_bounds = array<i64: 16, 32>}, {transform_indices = @transform_1, window_bounds = array<i64: 128, 32>}, {transform_indices = @transform_2, window_bounds = array<i64: 1, 128>}, {transform_indices = @transform_3, window_bounds = array<i64: 16, 128>}]} {
    %c0 = arith.constant 0 : index
    %c0_0 = arith.constant 0 : index
    %0 = vector.load %arg2[%c0, %c0_0] : memref<16x32xbf16, #tpu.memory_space<vmem>>, vector<16x32xbf16>
    %c0_1 = arith.constant 0 : index
    %c0_2 = arith.constant 0 : index
    %1 = vector.load %arg3[%c0_1, %c0_2] : memref<128x32xbf16, #tpu.memory_space<vmem>>, vector<128x32xbf16>
    %cst = arith.constant dense<0.000000e+00> : vector<16x128xf32>
    %2 = tpu.matmul %0, %1, %cst {dimension_numbers = #tpu.dot_dimension_numbers<[1], [1], [0], [0], [0, 0, 1, 0], [], []>} : vector<16x32xbf16>, vector<128x32xbf16>, vector<16x128xf32> -> vector<16x128xf32>
    %c0_3 = arith.constant 0 : index
    %c0_4 = arith.constant 0 : index
    %3 = vector.load %arg4[%c0_3, %c0_4] : memref<1x128xf32, #tpu.memory_space<vmem>>, vector<1x128xf32>
    %4 = vector.broadcast %3 : vector<1x128xf32> to vector<16x128xf32>
    %5 = arith.addf %2, %4 : vector<16x128xf32>
    %c0_5 = arith.constant 0 : index
    %c0_6 = arith.constant 0 : index
    %6 = vector.load %arg5[%c0_5, %c0_6] : memref<16x128xf32, #tpu.memory_space<vmem>>, vector<16x128xf32>
    tpu.vector_store %arg5[%c0_5, %c0_6], %5 {strides = array<i32>} : memref<16x128xf32, #tpu.memory_space<vmem>>, vector<16x128xf32>,
    return
  }
  func.func @transform_0(%arg0: i32, %arg1: i32) -> (i32, i32) {
    %c0_i32 = arith.constant 0 : i32
    %c0_i32_0 = arith.constant 0 : i32
    return %arg1, %c0_i32 : i32, i32
  }
  func.func @transform_1(%arg0: i32, %arg1: i32) -> (i32, i32) {
    %c0_i32 = arith.constant 0 : i32
    %c0_i32_0 = arith.constant 0 : i32
    return %arg0, %c0_i32 : i32, i32
  }
  func.func @transform_2(%arg0: i32, %arg1: i32) -> (i32, i32) {
    %c0_i32 = arith.constant 0 : i32
    %c0_i32_0 = arith.constant 0 : i32
    return %c0_i32, %arg0 : i32, i32
  }
  func.func @transform_3(%arg0: i32, %arg1: i32) -> (i32, i32) {
    %c0_i32 = arith.constant 0 : i32
    return %arg1, %arg0 : i32, i32
  }
}

</mosaic_0001>

<llo_original>
// kernel: tpu_custom_call.1
$region0: #{tpu_custom_call.1}
  #allocation0 [shape = 'u32[]', space=smem, size = 0x4, offset = 0x4, fixed_abs, tag = 'smem constant byte address 0x4 - core index']
  #allocation1 [shape = 'u32[144,128]{1,0:T(1,128)}', space=vmem, size = 0x12000, scoped, tag = 'internal scratch']
  %s0 = inlined_call_operand.vmem [shape: bf16[16,32], index: 0, kind: input, shape index: {}]
  %s1 = inlined_call_operand.vmem [shape: bf16[128,32], index: 1, kind: input, shape index: {}]
  %s2 = inlined_call_operand.vmem [shape: f32[1,128], index: 2, kind: input, shape index: {}]
  %s3 = inlined_call_operand.hbm [shape: f32[16,128], index: 3, kind: output, shape index: {}]
  %s4 = sld [smem:[#allocation0]]
  $region22: #{tpu_custom_call.1} parent=0
    _
  %s6 = ssub.s32 1, %s4
  %s7 = scalar_select 0, %s6, %s4
  $region1: #{tpu_custom_call.1} parent=0
    #allocation2 [shape = 'u8[8192]{0}', space=vmem, size = 0x2000, scoped, tag = 'output window, operand 0, single buffered']
    #allocation3 [shape = 's32[1]{0}', space=sflag, size = 0x4, scoped, tag = 'scoped memory for tpu_custom_call.1']
    %8 = vsyncpa [#allocation3], 0
    // Predicated region
    $region2: #{tpu_custom_call.1} parent=1 // pred_check
      _
    $region3: #{tpu_custom_call.1} parent=1 // pred_check_branch
      %10 = sbr.rel (0) target = $region5
    $region4: #{tpu_custom_call.1} parent=1 // pred_region
      _
    $region5: #{tpu_custom_call.1} parent=1 // pred_fallthru
      _
    // Predicated region
    $region6: #{tpu_custom_call.1} parent=1 // pred_check
      _
    $region7: #{tpu_custom_call.1} parent=1 // pred_check_branch
      %12 = sbr.rel (0) target = $region9
    $region8: #{tpu_custom_call.1} parent=1 // pred_region
      _
    $region9: #{tpu_custom_call.1} parent=1 // pred_fallthru
      _
    // Predicated region
    $region10: #{tpu_custom_call.1} parent=1 // pred_check
      _
    $region11: #{tpu_custom_call.1} parent=1 // pred_check_branch
      %14 = sbr.rel (0) target = $region13
    $region12: #{tpu_custom_call.1} parent=1 // pred_region
      _
    $region13: #{tpu_custom_call.1} parent=1 // pred_fallthru
      _
    %v16 = vld [vmem:[%s0] sm:$0xf]
    %v17 = vld [vmem:[%s0 + $0x4] sm:$0xf]
    %v18 = vld [vmem:[%s1] sm:$0xf]
    %v19 = vld [vmem:[%s1 + $0x4] sm:$0xf]
    %v20 = vld [vmem:[%s1 + $0x8] sm:$0xf]
    %v21 = vld [vmem:[%s1 + $0xc] sm:$0xf]
    %v22 = vld [vmem:[%s1 + $0x10] sm:$0xf]
    %v23 = vld [vmem:[%s1 + $0x14] sm:$0xf]
    %v24 = vld [vmem:[%s1 + $0x18] sm:$0xf]
    %v25 = vld [vmem:[%s1 + $0x1c] sm:$0xf]
    %v26 = vld [vmem:[%s1 + $0x20] sm:$0xf]
    %v27 = vld [vmem:[%s1 + $0x24] sm:$0xf]
    %v28 = vld [vmem:[%s1 + $0x28] sm:$0xf]
    %v29 = vld [vmem:[%s1 + $0x2c] sm:$0xf]
    %v30 = vld [vmem:[%s1 + $0x30] sm:$0xf]
    %v31 = vld [vmem:[%s1 + $0x34] sm:$0xf]
    %v32 = vld [vmem:[%s1 + $0x38] sm:$0xf]
    %v33 = vld [vmem:[%s1 + $0x3c] sm:$0xf]
    %v34 = vld [vmem:[%s2] sm:$0x1]
    %v36 = vlaneseq
    %v37 = vshrl.u32 %v36, 7
    %v38 = vsub.s32 0, %v37
    %v39 = vrot.slane %v34, %v38
    %v43 = vunpack.c.l.b16 %v16
    %v44 = vunpack.c.l.b16 %v17
    %v45 = vpack.c.b16 %v44, %v43
    %v62 = vunpack.c.l.b16 %v18
    %v63 = vunpack.c.l.b16 %v19
    %v64 = vunpack.c.l.b16 %v20
    %v65 = vunpack.c.l.b16 %v21
    %v66 = vunpack.c.l.b16 %v22
    %v67 = vunpack.c.l.b16 %v23
    %v68 = vunpack.c.l.b16 %v24
    %v69 = vunpack.c.l.b16 %v25
    %v70 = vunpack.c.l.b16 %v26
    %v71 = vunpack.c.l.b16 %v27
    %v72 = vunpack.c.l.b16 %v28
    %v73 = vunpack.c.l.b16 %v29
    %v74 = vunpack.c.l.b16 %v30
    %v75 = vunpack.c.l.b16 %v31
    %v76 = vunpack.c.l.b16 %v32
    %v77 = vunpack.c.l.b16 %v33
    %v78 = vpack.c.b16 %v63, %v62
    %v79 = vpack.c.b16 %v65, %v64
    %v80 = vpack.c.b16 %v67, %v66
    %v81 = vpack.c.b16 %v69, %v68
    %v82 = vpack.c.b16 %v71, %v70
    %v83 = vpack.c.b16 %v73, %v72
    %v84 = vpack.c.b16 %v75, %v74
    %v85 = vpack.c.b16 %v77, %v76
    %vm86 = vcmask 261120
    %v88 = vsel %vm86, %v45, 0
    %v91 = vsel %vm86, %v78, 0
    %v94 = vsel %vm86, %v79, 0
    %v97 = vsel %vm86, %v80, 0
    %v100 = vsel %vm86, %v81, 0
    %v103 = vsel %vm86, %v82, 0
    %v106 = vsel %vm86, %v83, 0
    %v109 = vsel %vm86, %v84, 0
    %v112 = vsel %vm86, %v85, 0
    %114 = vmatprep.subr.bf16.mxu0 0
    %115 = vmatpush1.bf16.xpose.msra.mxu0 %v91
    %116 = vmatprep.subr.bf16.mxu0 0
    %117 = vmatpush1.bf16.xpose.msra.mxu0 %v94
    %118 = vmatprep.subr.bf16.mxu0 0
    %119 = vmatpush1.bf16.xpose.msra.mxu0 %v97
    %120 = vmatprep.subr.bf16.mxu0 0
    %121 = vmatpush1.bf16.xpose.msra.mxu0 %v100
    %122 = vmatprep.subr.bf16.mxu0 0
    %123 = vmatpush1.bf16.xpose.msra.mxu0 %v103
    %124 = vmatprep.subr.bf16.mxu0 0
    %125 = vmatpush1.bf16.xpose.msra.mxu0 %v106
    %126 = vmatprep.subr.bf16.mxu0 0
    %127 = vmatpush1.bf16.xpose.msra.mxu0 %v109
    %128 = vmatprep.subr.bf16.mxu0 0
    %129 = vmatpush1.bf16.xpose.msra.mxu0 %v112
    %130 = vmatprep.subr.bf16.mxu0 0
    %131 = vmatpush1.bf16.xpose.msra.mxu0 0
    %132 = vmatprep.subr.bf16.mxu0 0
    %133 = vmatpush1.bf16.xpose.msra.mxu0 0
    %134 = vmatprep.subr.bf16.mxu0 0
    %135 = vmatpush1.bf16.xpose.msra.mxu0 0
    %136 = vmatprep.subr.bf16.mxu0 0
    %137 = vmatpush1.bf16.xpose.msra.mxu0 0
    %138 = vmatprep.subr.bf16.mxu0 0
    %139 = vmatpush1.bf16.xpose.msra.mxu0 0
    %140 = vmatprep.subr.bf16.mxu0 0
    %141 = vmatpush1.bf16.xpose.msra.mxu0 0
    %142 = vmatprep.subr.bf16.mxu0 0
    %143 = vmatpush1.bf16.xpose.msra.mxu0 0
    %144 = vmatprep.subr.bf16.mxu0 0
    %145 = vmatpush1.bf16.xpose.msra.mxu0 0
    %146 = vmatprep.mubr.bf16.mxu0 0
    %147 = vmatmul.mubr.bf16.gmra.mrb[0].mxu0 %v88
    %v148 = vpop.f32.mrb[0].mxu0
    %v149 = vadd.f32 %v39, %v148
    %v150 = vpop.f32.mrb[0].mxu0
    %v151 = vpop.f32.mrb[0].mxu0
    %v152 = vadd.f32 %v39, %v151
    %v153 = vpop.f32.mrb[0].mxu0
    %154 = vdwg.mxu0
    %155 = vst [vmem:[#allocation2] sm:$0xff] %v149
    %156 = vst [vmem:[#allocation2 + $0x8] sm:$0xff] %v152
    // Predicated region
    $region14: #{tpu_custom_call.1} parent=1 // pred_check
      _
    $region15: #{tpu_custom_call.1} parent=1 // pred_check_branch
      %158 = sbr.rel (0) target = $region17
    $region16: #{tpu_custom_call.1} parent=1 // pred_region
      %s160 = ssub.s32 256, 256
      %161 = vsyncadd [#allocation3], %s160
      %s162 = sshll.u32 [#allocation2], 4
      %s163 = int_to_ptr.vmem [resolvable:$true] %s162
      %168 = dma.vmem_to_hbm [thread:$0]  %s163, 256, %s3, [#allocation3], 128, 128, 8
    $region17: #{tpu_custom_call.1} parent=1 // pred_fallthru
      _
    // Predicated region
    $region18: #{tpu_custom_call.1} parent=1 // pred_check
      _
    $region19: #{tpu_custom_call.1} parent=1 // pred_check_branch
      %170 = sbr.rel (0) target = $region21
    $region20: #{tpu_custom_call.1} parent=1 // pred_region
      %171 = dma.done [#allocation3], 256
    $region21: #{tpu_custom_call.1} parent=1 // pred_fallthru
      _
    %172 = vsyncpa [#allocation3], 1

</llo_original>
